<compile_context>
chip_gen: v7x
topology: tpu7x:2x2x1
jax: 0.10.0
libtpu: 0.0.40
codegen_flags: <defaults>
</compile_context>

<pallas_src>
import functools

import jax
import jax.numpy as jnp
from jax.experimental import pallas as pl
from jax.experimental.pallas import tpu as pltpu


def _focal_loss_kernel(alpha_ref, preds_ref, labels_ref, out_ref, *,
                       gamma, num_rows, out_w):
    # alpha_ref : SMEM (C,)          f32   (scalar-prefetched)
    # preds_ref : VMEM (C, TILE_R)   f32   (classes on sublanes, rows on lanes)
    # labels_ref: VMEM (1, TILE_R)   i32
    # out_ref   : VMEM (1, out_w)    f32   per-block lane-partial sums
    C, tile_r = preds_ref.shape
    i = pl.program_id(0)

    labels = labels_ref[...]                                        # (1, TILE_R) i32
    col = jax.lax.broadcasted_iota(jnp.int32, (1, tile_r), 1)
    valid = (i * tile_r + col) < num_rows                           # ragged last tile

    # Per-class logit rows, unrolled over the (small) class/sublane axis.
    xs = [preds_ref[c:c + 1, :] for c in range(C)]                  # C x (1, TILE_R)

    # Numerically stable log-softmax, unrolled 3-term reductions (no lane reduce).
    m = xs[0]
    for c in range(1, C):
        m = jnp.maximum(m, xs[c])
    zs = [xs[c] - m for c in range(C)]
    denom = jnp.exp(zs[0])
    for c in range(1, C):
        denom = denom + jnp.exp(zs[c])
    lse = jnp.log(denom)                                            # (1, TILE_R)

    # Gather log-softmax at the label and alpha[label] via select chains over C.
    logp = jnp.zeros((1, tile_r), jnp.float32)
    a_sel = jnp.zeros((1, tile_r), jnp.float32)
    for c in range(C):
        hit = labels == c
        logp = jnp.where(hit, zs[c] - lse, logp)
        a_sel = jnp.where(hit, alpha_ref[c], a_sel)

    p = jnp.exp(logp)
    omp = 1.0 - p
    g = float(gamma)
    if g == int(g) and 0 <= int(g) <= 8:
        # Integer gamma (the default 2): repeated multiply on the VPU.
        w = jnp.ones_like(omp)
        for _ in range(int(g)):
            w = w * omp
    else:
        w = jnp.power(omp, jnp.float32(g))

    loss = -a_sel * w * logp
    loss = jnp.where(valid, loss, 0.0)                              # kill stale/ragged lanes

    # Fold the (1, TILE_R) losses down to (1, out_w) lane-partials (128-aligned slices).
    part = loss[:, 0:out_w]
    for j in range(1, tile_r // out_w):
        part = part + loss[:, j * out_w:(j + 1) * out_w]
    out_ref[...] = part


def focal_loss_pallas(preds, labels, alpha, gamma=2.0, size_average=True,
                      max_tile=65536):
    """preds: (..., C) float, labels: (...) int, alpha: (C,) float."""
    C = preds.shape[-1]
    preds2 = preds.reshape(-1, C)
    R = preds2.shape[0]

    # Lane-major layout: rows on the last (128-lane) axis.
    preds_t = jnp.transpose(preds2.astype(jnp.float32))             # (C, R)
    labels2 = labels.reshape(1, -1).astype(jnp.int32)               # (1, R)
    alpha1 = alpha.astype(jnp.float32).reshape(C)                   # (C,) -> SMEM

    if R <= max_tile:
        tile_r = R            # single full-array block (always a legal block shape)
        out_w = R
        num_blocks = 1
    else:
        tile_r = max_tile     # multiple of 128; ragged last block masked in-kernel
        out_w = 128
        num_blocks = int(pl.cdiv(R, tile_r))

    kernel = functools.partial(_focal_loss_kernel, gamma=float(gamma),
                               num_rows=R, out_w=out_w)

    partials = pl.pallas_call(
        kernel,
        out_shape=jax.ShapeDtypeStruct((1, num_blocks * out_w), jnp.float32),
        grid_spec=pltpu.PrefetchScalarGridSpec(
            num_scalar_prefetch=1,                                  # alpha -> SMEM
            grid=(num_blocks,),
            in_specs=[
                pl.BlockSpec((C, tile_r), lambda i, a: (0, i)),     # preds (C, R)
                pl.BlockSpec((1, tile_r), lambda i, a: (0, i)),     # labels (1, R)
            ],
            out_specs=pl.BlockSpec((1, out_w), lambda i, a: (0, i)),
        ),
        compiler_params=pltpu.CompilerParams(
            dimension_semantics=("parallel",)),                     # megacore-friendly
    )(alpha1, preds_t, labels2)

    total = jnp.sum(partials)
    if size_average:
        return total / jnp.float32(R)
    return total


def focal_loss_reference(preds, labels, alpha, gamma=2.0, size_average=True):
    C = preds.shape[-1]
    preds2 = preds.reshape(-1, C).astype(jnp.float32)
    labels1 = labels.reshape(-1).astype(jnp.int32)
    logsoft = jax.nn.log_softmax(preds2, axis=1)
    logp = jnp.take_along_axis(logsoft, labels1[:, None], axis=1)[:, 0]
    p = jnp.exp(logp)
    a = alpha.astype(jnp.float32)[labels1]
    loss = -a * (1.0 - p) ** gamma * logp
    return loss.mean() if size_average else loss.sum()


if __name__ == "__main__":
    # Module defaults: alpha=None -> ones(num_classes), gamma=2, num_classes=3.
    num_classes = 3
    gamma = 2.0
    alpha = jnp.ones((num_classes,), jnp.float32)

    key = jax.random.PRNGKey(0)
    kp, kl, kp2, kl2 = jax.random.split(key, 4)

    # Small detection-style input: preds [B, N, C], labels [B, N] (single-block path).
    B, N = 2, 8
    preds = jax.random.normal(kp, (B, N, num_classes), dtype=jnp.float32)
    labels = jax.random.randint(kl, (B, N), 0, num_classes, dtype=jnp.int32)

    out = focal_loss_pallas(preds, labels, alpha, gamma=gamma, size_average=True)
    out = jax.block_until_ready(out)
    ref = focal_loss_reference(preds, labels, alpha, gamma=gamma, size_average=True)
    assert jnp.allclose(out, ref, rtol=1e-5, atol=1e-5), (out, ref)

    # Slightly larger input forcing the multi-block + ragged-last-tile path.
    B2, N2 = 2, 300
    preds2 = jax.random.normal(kp2, (B2, N2, num_classes), dtype=jnp.float32)
    labels2 = jax.random.randint(kl2, (B2, N2), 0, num_classes, dtype=jnp.int32)

    out2 = focal_loss_pallas(preds2, labels2, alpha, gamma=gamma,
                             size_average=True, max_tile=256)
    out2 = jax.block_until_ready(out2)
    ref2 = focal_loss_reference(preds2, labels2, alpha, gamma=gamma, size_average=True)
    assert jnp.allclose(out2, ref2, rtol=1e-5, atol=1e-5), (out2, ref2)

    out3 = focal_loss_pallas(preds2, labels2, alpha, gamma=gamma,
                             size_average=False, max_tile=256)
    out3 = jax.block_until_ready(out3)
    ref3 = focal_loss_reference(preds2, labels2, alpha, gamma=gamma, size_average=False)
    assert jnp.allclose(out3, ref3, rtol=1e-5, atol=1e-5), (out3, ref3)

    print("KERNEL_OK")
</pallas_src>

<mosaic_0001>
module attributes {stable_mosaic.version = 11 : i64} {
  func.func @_focal_loss_kernel(%arg0: i32, %arg1: memref<3xf32, #tpu.memory_space<smem>>, %arg2: memref<3x16xf32, #tpu.memory_space<vmem>>, %arg3: memref<1x16xi32, #tpu.memory_space<vmem>>, %arg4: memref<1x16xf32, #tpu.memory_space<vmem>>) attributes {dimension_semantics = [#tpu.dimension_semantics<parallel>], iteration_bounds = array<i64: 1>, scalar_prefetch = 1 : i64, scratch_operands = 0 : i64, tpu.core_type = #tpu.core_type<tc>, window_params = [{transform_indices = @transform_0, window_bounds = array<i64: 3, 16>}, {transform_indices = @transform_1, window_bounds = array<i64: 1, 16>}, {transform_indices = @transform_2, window_bounds = array<i64: 1, 16>}]} {
    %c0 = arith.constant 0 : index
    %c0_0 = arith.constant 0 : index
    %0 = vector.load %arg3[%c0, %c0_0] : memref<1x16xi32, #tpu.memory_space<vmem>>, vector<1x16xi32>
    %1 = tpu.iota {dimensions = array<i32: 1>} : vector<1x16xi32>
    %c16_i32 = arith.constant 16 : i32
    %2 = arith.muli %arg0, %c16_i32 : i32
    %3 = vector.broadcast %2 : i32 to vector<1x16xi32>
    %4 = arith.addi %3, %1 : vector<1x16xi32>
    %c16_i32_1 = arith.constant 16 : i32
    %5 = vector.broadcast %c16_i32_1 : i32 to vector<1x16xi32>
    %6 = arith.cmpi slt, %4, %5 : vector<1x16xi32>
    %c0_2 = arith.constant 0 : index
    %c0_3 = arith.constant 0 : index
    %7 = vector.load %arg2[%c0_2, %c0_3] : memref<3x16xf32, #tpu.memory_space<vmem>>, vector<1x16xf32>
    %c1 = arith.constant 1 : index
    %c0_4 = arith.constant 0 : index
    %8 = vector.load %arg2[%c1, %c0_4] : memref<3x16xf32, #tpu.memory_space<vmem>>, vector<1x16xf32>
    %c2 = arith.constant 2 : index
    %c0_5 = arith.constant 0 : index
    %9 = vector.load %arg2[%c2, %c0_5] : memref<3x16xf32, #tpu.memory_space<vmem>>, vector<1x16xf32>
    %10 = arith.maximumf %7, %8 : vector<1x16xf32>
    %11 = arith.maximumf %10, %9 : vector<1x16xf32>
    %12 = arith.subf %7, %11 : vector<1x16xf32>
    %13 = arith.subf %8, %11 : vector<1x16xf32>
    %14 = arith.subf %9, %11 : vector<1x16xf32>
    %15 = math.exp %12 : vector<1x16xf32>
    %16 = math.exp %13 : vector<1x16xf32>
    %17 = arith.addf %15, %16 : vector<1x16xf32>
    %18 = math.exp %14 : vector<1x16xf32>
    %19 = arith.addf %17, %18 : vector<1x16xf32>
    %20 = math.log %19 : vector<1x16xf32>
    %cst = arith.constant 0.000000e+00 : f32
    %21 = vector.broadcast %cst : f32 to vector<1x16xf32>
    %cst_6 = arith.constant 0.000000e+00 : f32
    %22 = vector.broadcast %cst_6 : f32 to vector<1x16xf32>
    %c0_i32 = arith.constant 0 : i32
    %23 = vector.broadcast %c0_i32 : i32 to vector<1x16xi32>
    %24 = arith.cmpi eq, %0, %23 : vector<1x16xi32>
    %25 = arith.subf %12, %20 : vector<1x16xf32>
    %26 = arith.select %24, %25, %21 : vector<1x16xi1>, vector<1x16xf32>
    %c0_7 = arith.constant 0 : index
    %27 = memref.load %arg1[%c0_7] : memref<3xf32, #tpu.memory_space<smem>>
    %28 = vector.broadcast %27 : f32 to vector<1x16xf32>
    %29 = arith.select %24, %28, %22 : vector<1x16xi1>, vector<1x16xf32>
    %c1_i32 = arith.constant 1 : i32
    %30 = vector.broadcast %c1_i32 : i32 to vector<1x16xi32>
    %31 = arith.cmpi eq, %0, %30 : vector<1x16xi32>
    %32 = arith.subf %13, %20 : vector<1x16xf32>
    %33 = arith.select %31, %32, %26 : vector<1x16xi1>, vector<1x16xf32>
    %c1_8 = arith.constant 1 : index
    %34 = memref.load %arg1[%c1_8] : memref<3xf32, #tpu.memory_space<smem>>
    %35 = vector.broadcast %34 : f32 to vector<1x16xf32>
    %36 = arith.select %31, %35, %29 : vector<1x16xi1>, vector<1x16xf32>
    %c2_i32 = arith.constant 2 : i32
    %37 = vector.broadcast %c2_i32 : i32 to vector<1x16xi32>
    %38 = arith.cmpi eq, %0, %37 : vector<1x16xi32>
    %39 = arith.subf %14, %20 : vector<1x16xf32>
    %40 = arith.select %38, %39, %33 : vector<1x16xi1>, vector<1x16xf32>
    %c2_9 = arith.constant 2 : index
    %41 = memref.load %arg1[%c2_9] : memref<3xf32, #tpu.memory_space<smem>>
    %42 = vector.broadcast %41 : f32 to vector<1x16xf32>
    %43 = arith.select %38, %42, %36 : vector<1x16xi1>, vector<1x16xf32>
    %44 = math.exp %40 : vector<1x16xf32>
    %cst_10 = arith.constant 1.000000e+00 : f32
    %45 = vector.broadcast %cst_10 : f32 to vector<1x16xf32>
    %46 = arith.subf %45, %44 : vector<1x16xf32>
    %cst_11 = arith.constant 1.000000e+00 : f32
    %47 = vector.broadcast %cst_11 : f32 to vector<1x16xf32>
    %48 = arith.mulf %47, %46 : vector<1x16xf32>
    %49 = arith.mulf %48, %46 : vector<1x16xf32>
    %cst_12 = arith.constant 0.000000e+00 : f32
    %50 = vector.broadcast %cst_12 : f32 to vector<1x16xf32>
    %51 = arith.subf %50, %43 : vector<1x16xf32>
    %52 = arith.mulf %51, %49 : vector<1x16xf32>
    %53 = arith.mulf %52, %40 : vector<1x16xf32>
    %cst_13 = arith.constant 0.000000e+00 : f32
    %54 = vector.broadcast %cst_13 : f32 to vector<1x16xf32>
    %55 = arith.select %6, %53, %54 : vector<1x16xi1>, vector<1x16xf32>
    %c0_14 = arith.constant 0 : index
    %c0_15 = arith.constant 0 : index
    %56 = vector.load %arg4[%c0_14, %c0_15] : memref<1x16xf32, #tpu.memory_space<vmem>>, vector<1x16xf32>
    tpu.vector_store %arg4[%c0_14, %c0_15], %55 {strides = array<i32>} : memref<1x16xf32, #tpu.memory_space<vmem>>, vector<1x16xf32>,
    return
  }
  func.func @transform_0(%arg0: i32, %arg1: memref<3xf32, #tpu.memory_space<smem>>) -> (i32, i32) {
    %c0_i32 = arith.constant 0 : i32
    %c0_i32_0 = arith.constant 0 : i32
    return %c0_i32, %arg0 : i32, i32
  }
  func.func @transform_1(%arg0: i32, %arg1: memref<3xf32, #tpu.memory_space<smem>>) -> (i32, i32) {
    %c0_i32 = arith.constant 0 : i32
    %c0_i32_0 = arith.constant 0 : i32
    return %c0_i32, %arg0 : i32, i32
  }
  func.func @transform_2(%arg0: i32, %arg1: memref<3xf32, #tpu.memory_space<smem>>) -> (i32, i32) {
    %c0_i32 = arith.constant 0 : i32
    %c0_i32_0 = arith.constant 0 : i32
    return %c0_i32, %arg0 : i32, i32
  }
}

</mosaic_0001>

<llo_original>
// kernel: tpu_custom_call.1
$region0: #{tpu_custom_call.1}
  #allocation0 [shape = 'u32[]', space=smem, size = 0x4, offset = 0x4, fixed_abs, tag = 'smem constant byte address 0x4 - core index']
  #allocation1 [shape = 'u32[144,128]{1,0:T(1,128)}', space=vmem, size = 0x12000, scoped, tag = 'internal scratch']
  #allocation2 [shape = 's32[1]{0}', space=sflag, size = 0x4, scoped, tag = 'scoped memory for tpu_custom_call.1']
  #allocation3 [shape = 'u8[512]{0}', space=smem, size = 0x200, scoped, tag = 'prefetched SMEM operand 0']
  %s0 = inlined_call_operand.hbm [shape: f32[3], index: 0, kind: input, shape index: {}]
  %s1 = inlined_call_operand.hbm [shape: f32[3,16], index: 1, kind: input, shape index: {}]
  %s2 = inlined_call_operand.vmem [shape: s32[1,16], index: 2, kind: input, shape index: {}]
  %s3 = inlined_call_operand.hbm [shape: f32[1,16], index: 3, kind: output, shape index: {}]
  %s4 = sld [smem:[#allocation0]]
  $region22: #{tpu_custom_call.1} parent=0
    _
  %s6 = ssub.s32 1, %s4
  %s7 = scalar_select 0, %s6, %s4
  %9 = dma.hbm_to_smem %s0, 16, [#allocation3], [#allocation2]
  %10 = dma.done [#allocation2], 16
  %11 = sfence
  $region1: #{tpu_custom_call.1} parent=0
    #allocation4 [shape = 'u8[2048]{0}', space=vmem, size = 0x800, scoped, tag = 'input window, operand 1, single buffered']
    #allocation5 [shape = 's32[1]{0}', space=sflag, size = 0x4, scoped, tag = 'scoped memory for tpu_custom_call.1']
    #allocation6 [shape = 's32[1]{0}', space=sflag, size = 0x4, scoped, tag = 'scoped memory for tpu_custom_call.1']
    #allocation7 [shape = 'u8[512]{0}', space=vmem, size = 0x400, scoped, tag = 'output window, operand 0, single buffered']
    %12 = vsyncpa [#allocation5], 0
    %13 = vsyncpa [#allocation6], 0
    // Predicated region
    $region2: #{tpu_custom_call.1} parent=1 // pred_check
      _
    $region3: #{tpu_custom_call.1} parent=1 // pred_check_branch
      %15 = sbr.rel (0) target = $region5
    $region4: #{tpu_custom_call.1} parent=1 // pred_region
      %s17 = ssub.s32 64, 64
      %18 = vsyncadd [#allocation5], %s17
      %s20 = sshll.u32 [#allocation4], 4
      %s21 = int_to_ptr.vmem [resolvable:$true] %s20
      %23 = dma.hbm_to_vmem [thread:$0]  %s1, 64, %s21, [#allocation5]
    $region5: #{tpu_custom_call.1} parent=1 // pred_fallthru
      _
    // Predicated region
    $region6: #{tpu_custom_call.1} parent=1 // pred_check
      _
    $region7: #{tpu_custom_call.1} parent=1 // pred_check_branch
      %25 = sbr.rel (0) target = $region9
    $region8: #{tpu_custom_call.1} parent=1 // pred_region
      _
    $region9: #{tpu_custom_call.1} parent=1 // pred_fallthru
      _
    // Predicated region
    $region10: #{tpu_custom_call.1} parent=1 // pred_check
      _
    $region11: #{tpu_custom_call.1} parent=1 // pred_check_branch
      %27 = sbr.rel (0) target = $region13
    $region12: #{tpu_custom_call.1} parent=1 // pred_region
      %28 = dma.done [#allocation5], 64
    $region13: #{tpu_custom_call.1} parent=1 // pred_fallthru
      _
    %v29 = vld [vmem:[%s2] sm:$0x1]
    %v30 = vlaneseq
    %v31 = vand.u32 %v30, 127
    %s32 = smul.u32 0, 16
    %v33 = vstv %s32
    %v34 = vadd.s32 %v33, %v31
    %vm35 = vcmp.lt.s32.totalorder %v34, 16
    %v36 = vld [vmem:[#allocation4] sm:$0x1]
    %v37 = vld [vmem:[#allocation4 + $0x1] sm:$0x1]
    %v38 = vld [vmem:[#allocation4 + $0x2] sm:$0x1]
    %v39 = vmax.f32 %v36, %v37
    %v40 = vmax.f32 %v39, %v38
    %v41 = vsub.f32 %v36, %v40
    %v42 = vsub.f32 %v37, %v40
    %v43 = vsub.f32 %v38, %v40
    %v44 = vmul.f32 %v41, 1.442695
    %v45 = vpow.pop %v44
    %v46 = vmul.f32 %v42, 1.442695
    %v47 = vpow.pop %v46
    %v48 = vadd.f32 %v45, %v47
    %v49 = vmul.f32 %v43, 1.442695
    %v50 = vpow.pop %v49
    %v51 = vadd.f32 %v48, %v50
    %v52 = vlog2.pop %v51
    %v53 = vmul.f32 %v52, 0.6931472
    %vm54 = vcmp.eq.s32.totalorder %v29, 0
    %v55 = vsub.f32 %v41, %v53
    %v56 = vsel %vm54, %v55, 0.0
    %s57 = sld [smem:[#allocation3]]
    %v58 = vstv %s57
    %v59 = vsel %vm54, %v58, 0.0
    %vm60 = vcmp.eq.s32.totalorder %v29, 1
    %v61 = vsub.f32 %v42, %v53
    %v62 = vsel %vm60, %v61, %v56
    %s63 = sld [smem:[#allocation3 + $0x1]]
    %v64 = vstv %s63
    %v65 = vsel %vm60, %v64, %v59
    %vm66 = vcmp.eq.s32.totalorder %v29, 2
    %v67 = vsub.f32 %v43, %v53
    %v68 = vsel %vm66, %v67, %v62
    %s69 = sld [smem:[#allocation3 + $0x2]]
    %v70 = vstv %s69
    %v71 = vsel %vm66, %v70, %v65
    %v72 = vmul.f32 %v68, 1.442695
    %v73 = vpow.pop %v72
    %v74 = vsub.f32 1.0, %v73
    %v75 = vmul.f32 %v74, %v74
    %v76 = vsub.f32 0.0, %v71
    %v77 = vmul.f32 %v76, %v75
    %v78 = vmul.f32 %v77, %v68
    %v79 = vsel %vm35, %v78, 0.0
    %vm80 = vcmask 122880
    %81 = vst.msk [vmem:[#allocation7] sm:$0x1] %vm80, %v79
    // Predicated region
    $region14: #{tpu_custom_call.1} parent=1 // pred_check
      _
    $region15: #{tpu_custom_call.1} parent=1 // pred_check_branch
      %83 = sbr.rel (0) target = $region17
    $region16: #{tpu_custom_call.1} parent=1 // pred_region
      %s85 = ssub.s32 16, 16
      %86 = vsyncadd [#allocation6], %s85
      %s88 = sshll.u32 [#allocation7], 4
      %s89 = int_to_ptr.vmem [resolvable:$true] %s88
      %91 = dma.vmem_to_hbm [thread:$0]  %s89, 16, %s3, [#allocation6]
    $region17: #{tpu_custom_call.1} parent=1 // pred_fallthru
      _
    // Predicated region
    $region18: #{tpu_custom_call.1} parent=1 // pred_check
      _
    $region19: #{tpu_custom_call.1} parent=1 // pred_check_branch
      %93 = sbr.rel (0) target = $region21
    $region20: #{tpu_custom_call.1} parent=1 // pred_region
      %94 = dma.done [#allocation6], 16
    $region21: #{tpu_custom_call.1} parent=1 // pred_fallthru
      _
    %95 = vsyncpa [#allocation5], 1
    %96 = vsyncpa [#allocation6], 1

</llo_original>
